<compile_context>
chip_gen: v7x
topology: tpu7x:2x2x1
jax: 0.10.0
libtpu: 0.0.40
codegen_flags: <defaults>
</compile_context>

<pallas_src>
import functools

import jax
import jax.numpy as jnp
from jax.experimental import pallas as pl
from jax.experimental.pallas import tpu as pltpu

NUM_FEATURES = 7
H1, H2, H3, HOUT = 28, 56, 112, 1
BN_EPS = 1e-5


def _round_up(n, m):
    return -(-n // m) * m


# Packed-bias segment offsets: each segment padded to a multiple of 8 rows so
# the in-kernel static slices stay sublane-aligned.  Offsets: 0/32/88/200,
# total 208 rows.
_BIAS_OFFS = []
_off = 0
for _h in (H1, H2, H3, HOUT):
    _BIAS_OFFS.append(_off)
    _off += _round_up(_h, 8)
_BIAS_TOTAL = _off


def _mlp_kernel(x_ref, w1_ref, w2_ref, w3_ref, w4_ref, b_ref, out_ref):
    """One batch tile: x_ref (7, TILE_B) -> out_ref (1, TILE_B).

    Weights are stored (out_features, in_features); biases are packed columns.
    tanh runs in the compute dtype (bf16 on v6e/v7x -> packed EUP), matmuls
    always accumulate in f32 on the MXU.
    """
    # TODO(synk): Dropout layers are train-time only (identity in eval mode);
    # no stochastic masking is applied here.
    cdt = w1_ref.dtype  # matmul / tanh dtype (f32, or bf16 on v6e/v7x)

    b1 = b_ref[_BIAS_OFFS[0]:_BIAS_OFFS[0] + H1, :]
    b2 = b_ref[_BIAS_OFFS[1]:_BIAS_OFFS[1] + H2, :]
    b3 = b_ref[_BIAS_OFFS[2]:_BIAS_OFFS[2] + H3, :]
    b4 = b_ref[_BIAS_OFFS[3]:_BIAS_OFFS[3] + HOUT, :]

    x = x_ref[...]
    # Linear(7,28) + Tanh   (eval-mode BatchNorm already folded into w1/b1).
    # Cast (dot + bias) to cdt *before* tanh -> bf16 EUP path on v6e/v7x.
    h = jnp.tanh((jnp.dot(w1_ref[...], x,
                          preferred_element_type=jnp.float32) + b1).astype(cdt))
    # Linear(28,56) + Tanh
    h = jnp.tanh((jnp.dot(w2_ref[...], h,
                          preferred_element_type=jnp.float32) + b2).astype(cdt))
    # Linear(56,112) + Tanh
    h = jnp.tanh((jnp.dot(w3_ref[...], h,
                          preferred_element_type=jnp.float32) + b3).astype(cdt))
    # Linear(112,1) + Sigmoid  -> (1,112) x (112,TILE_B): lane-dense output.
    logit = jnp.dot(w4_ref[...], h, preferred_element_type=jnp.float32) + b4
    out_ref[...] = jax.nn.sigmoid(logit).astype(out_ref.dtype)


def _fold_and_pack(params, compute_dtype):
    """Fold eval-mode BN into the first Linear, transpose weights, pack biases."""
    # xn = x*s + t,  s = gamma/sqrt(var+eps),  t = beta - mean*s
    # xn @ w1 + b1 = x @ (s[:,None]*w1) + (b1 + t @ w1)   (exact)
    s = params["bn_gamma"] / jnp.sqrt(params["bn_var"] + BN_EPS)   # (1, F)
    t = params["bn_beta"] - params["bn_mean"] * s                  # (1, F)
    w1f = params["w1"] * s.reshape(-1, 1)                          # (F, 28)
    b1f = params["b1"] + t @ params["w1"]                          # (1, 28)

    # (out_features, in_features) layout for lane-dense (hidden, TILE_B) compute.
    w1t = w1f.T.astype(compute_dtype)
    w2t = params["w2"].T.astype(compute_dtype)
    w3t = params["w3"].T.astype(compute_dtype)
    w4t = params["w4"].T.astype(compute_dtype)

    bias = jnp.zeros((_BIAS_TOTAL, 1), jnp.float32)
    for off, b in zip(_BIAS_OFFS,
                      (b1f, params["b2"], params["b3"], params["b4"])):
        bias = bias.at[off:off + b.shape[-1], 0].set(
            b.reshape(-1).astype(jnp.float32))
    return w1t, w2t, w3t, w4t, bias


def _resolve_compute_dtype(compute_dtype):
    """bf16 on v6e/v7x (bf16 VPU/EUP), f32 elsewhere (v5e has no bf16 EUP)."""
    if compute_dtype is not None:
        return compute_dtype
    try:
        kind = jax.devices()[0].device_kind.lower()
    except Exception:
        return jnp.float32
    if ("v6" in kind) or ("v7" in kind) or ("7x" in kind):
        return jnp.bfloat16
    return jnp.float32


@functools.partial(jax.jit, static_argnames=("tile_b", "compute_dtype"))
def neural_network_forward(x, params, *, tile_b=4096, compute_dtype=None):
    """x: (B, NUM_FEATURES) float -> (B, 1) sigmoid probabilities."""
    assert tile_b % 128 == 0, "batch tile must be lane-aligned (multiple of 128)"
    cdt = _resolve_compute_dtype(compute_dtype)
    B = x.shape[0]
    w1t, w2t, w3t, w4t, bias = _fold_and_pack(params, cdt)

    # Lane-aligned batch tile; partial last block is clipped/masked by Pallas,
    # so no host-side zero-pad materialization is needed.
    tb = min(tile_b, _round_up(max(B, 1), 128))
    grid = (pl.cdiv(B, tb),)
    x_t = x.astype(cdt).T               # (F, B): batch on the lane axis

    out_t = pl.pallas_call(
        _mlp_kernel,
        out_shape=jax.ShapeDtypeStruct((HOUT, B), jnp.float32),
        grid=grid,
        in_specs=[
            pl.BlockSpec((NUM_FEATURES, tb), lambda i: (0, i)),    # streamed
            pl.BlockSpec((H1, NUM_FEATURES), lambda i: (0, 0)),    # resident
            pl.BlockSpec((H2, H1), lambda i: (0, 0)),              # resident
            pl.BlockSpec((H3, H2), lambda i: (0, 0)),              # resident
            pl.BlockSpec((HOUT, H3), lambda i: (0, 0)),            # resident
            pl.BlockSpec((_BIAS_TOTAL, 1), lambda i: (0, 0)),      # resident
        ],
        out_specs=pl.BlockSpec((HOUT, tb), lambda i: (0, i)),
        compiler_params=pltpu.CompilerParams(
            # Batch axis is embarrassingly parallel.
            dimension_semantics=("parallel",),
        ),
    )(x_t, w1t, w2t, w3t, w4t, bias)
    return out_t.T                       # (B, 1)


def init_params(key):
    """PyTorch-style init; BN stats randomized so the BN fold is exercised."""
    dims = [(NUM_FEATURES, H1), (H1, H2), (H2, H3), (H3, HOUT)]
    key, kg, kb, km, kv = jax.random.split(key, 5)
    params = {
        "bn_gamma": jax.random.uniform(kg, (1, NUM_FEATURES), jnp.float32, 0.5, 1.5),
        "bn_beta": 0.1 * jax.random.normal(kb, (1, NUM_FEATURES), jnp.float32),
        "bn_mean": 0.1 * jax.random.normal(km, (1, NUM_FEATURES), jnp.float32),
        "bn_var": jax.random.uniform(kv, (1, NUM_FEATURES), jnp.float32, 0.5, 1.5),
    }
    for i, (fan_in, fan_out) in enumerate(dims, start=1):
        key, kw, kb2 = jax.random.split(key, 3)
        bound = 1.0 / (fan_in ** 0.5)
        params[f"w{i}"] = jax.random.uniform(
            kw, (fan_in, fan_out), jnp.float32, -bound, bound)
        params[f"b{i}"] = jax.random.uniform(
            kb2, (1, fan_out), jnp.float32, -bound, bound)
    return params


def _reference_forward(x, p):
    """Pure-JAX reference of the same eval-mode forward pass."""
    xn = (x - p["bn_mean"]) / jnp.sqrt(p["bn_var"] + BN_EPS) * p["bn_gamma"] + p["bn_beta"]
    h = jnp.tanh(xn @ p["w1"] + p["b1"])
    h = jnp.tanh(h @ p["w2"] + p["b2"])
    h = jnp.tanh(h @ p["w3"] + p["b3"])
    return jax.nn.sigmoid(h @ p["w4"] + p["b4"])


if __name__ == "__main__":
    key = jax.random.PRNGKey(0)
    key, kx1, kx2 = jax.random.split(key, 3)
    params = init_params(key)

    # 1) Explicit f32 path: tight tolerance vs. the reference.
    x_small = jax.random.normal(kx1, (8, NUM_FEATURES), jnp.float32)
    out_small = jax.block_until_ready(
        neural_network_forward(x_small, params, compute_dtype=jnp.float32))
    ref_small = _reference_forward(x_small, params)
    assert out_small.shape == (8, 1), out_small.shape
    assert jnp.allclose(out_small, ref_small, atol=1e-4, rtol=1e-4), (
        out_small, ref_small)

    # 2) Default (auto) path: bf16 compute on v6e/v7x, f32 on v5e; looser
    #    tolerance to cover bf16 quantization of inputs/weights/tanh.
    x_big = jax.random.normal(kx2, (384, NUM_FEATURES), jnp.float32)
    out_big = jax.block_until_ready(neural_network_forward(x_big, params))
    ref_big = _reference_forward(x_big, params)
    assert out_big.shape == (384, 1), out_big.shape
    assert jnp.allclose(out_big, ref_big, atol=2e-2, rtol=2e-2), (
        out_big, ref_big)

    # 3) Multi-step grid path (tiny tile only to exercise the pipelined grid;
    #    real workloads should keep the default 4096 tile).
    out_grid = jax.block_until_ready(
        neural_network_forward(x_big, params, tile_b=128,
                               compute_dtype=jnp.float32))
    assert jnp.allclose(out_grid, ref_big, atol=1e-4, rtol=1e-4), (
        out_grid, ref_big)

    print("KERNEL_OK")
</pallas_src>

<mosaic_0001>
module attributes {stable_mosaic.version = 11 : i64} {
  func.func @_mlp_kernel(%arg0: i32, %arg1: memref<7x128xf32, #tpu.memory_space<vmem>>, %arg2: memref<28x7xf32, #tpu.memory_space<vmem>>, %arg3: memref<56x28xf32, #tpu.memory_space<vmem>>, %arg4: memref<112x56xf32, #tpu.memory_space<vmem>>, %arg5: memref<1x112xf32, #tpu.memory_space<vmem>>, %arg6: memref<208x1xf32, #tpu.memory_space<vmem>>, %arg7: memref<1x128xf32, #tpu.memory_space<vmem>>) attributes {dimension_semantics = [#tpu.dimension_semantics<parallel>], iteration_bounds = array<i64: 1>, scalar_prefetch = 0 : i64, scratch_operands = 0 : i64, tpu.core_type = #tpu.core_type<tc>, window_params = [{transform_indices = @transform_0, window_bounds = array<i64: 7, 128>}, {pipeline_mode = #tpu.pipeline_mode<synchronous>, transform_indices = @transform_1, window_bounds = array<i64: 28, 7>}, {pipeline_mode = #tpu.pipeline_mode<synchronous>, transform_indices = @transform_2, window_bounds = array<i64: 56, 28>}, {pipeline_mode = #tpu.pipeline_mode<synchronous>, transform_indices = @transform_3, window_bounds = array<i64: 112, 56>}, {pipeline_mode = #tpu.pipeline_mode<synchronous>, transform_indices = @transform_4, window_bounds = array<i64: 1, 112>}, {pipeline_mode = #tpu.pipeline_mode<synchronous>, transform_indices = @transform_5, window_bounds = array<i64: 208, 1>}, {transform_indices = @transform_6, window_bounds = array<i64: 1, 128>}]} {
    %c0 = arith.constant 0 : index
    %c0_0 = arith.constant 0 : index
    %0 = vector.load %arg6[%c0, %c0_0] : memref<208x1xf32, #tpu.memory_space<vmem>>, vector<28x1xf32>
    %c32 = arith.constant 32 : index
    %c0_1 = arith.constant 0 : index
    %1 = vector.load %arg6[%c32, %c0_1] : memref<208x1xf32, #tpu.memory_space<vmem>>, vector<56x1xf32>
    %c88 = arith.constant 88 : index
    %c0_2 = arith.constant 0 : index
    %2 = vector.load %arg6[%c88, %c0_2] : memref<208x1xf32, #tpu.memory_space<vmem>>, vector<112x1xf32>
    %c200 = arith.constant 200 : index
    %c0_3 = arith.constant 0 : index
    %3 = vector.load %arg6[%c200, %c0_3] : memref<208x1xf32, #tpu.memory_space<vmem>>, vector<1x1xf32>
    %c0_4 = arith.constant 0 : index
    %c0_5 = arith.constant 0 : index
    %4 = vector.load %arg1[%c0_4, %c0_5] : memref<7x128xf32, #tpu.memory_space<vmem>>, vector<7x128xf32>
    %c0_6 = arith.constant 0 : index
    %c0_7 = arith.constant 0 : index
    %5 = vector.load %arg2[%c0_6, %c0_7] : memref<28x7xf32, #tpu.memory_space<vmem>>, vector<28x7xf32>
    %cst = arith.constant dense<0.000000e+00> : vector<28x128xf32>
    %6 = tpu.matmul %5, %4, %cst {dimension_numbers = #tpu.dot_dimension_numbers<[1], [0], [0], [1], [0, 0, 1, 1], [], []>} : vector<28x7xf32>, vector<7x128xf32>, vector<28x128xf32> -> vector<28x128xf32>
    %7 = vector.broadcast %0 : vector<28x1xf32> to vector<28x128xf32>
    %8 = arith.addf %6, %7 : vector<28x128xf32>
    %9 = math.tanh %8 : vector<28x128xf32>
    %c0_8 = arith.constant 0 : index
    %c0_9 = arith.constant 0 : index
    %10 = vector.load %arg3[%c0_8, %c0_9] : memref<56x28xf32, #tpu.memory_space<vmem>>, vector<56x28xf32>
    %cst_10 = arith.constant dense<0.000000e+00> : vector<56x128xf32>
    %11 = tpu.matmul %10, %9, %cst_10 {dimension_numbers = #tpu.dot_dimension_numbers<[1], [0], [0], [1], [0, 0, 1, 1], [], []>} : vector<56x28xf32>, vector<28x128xf32>, vector<56x128xf32> -> vector<56x128xf32>
    %12 = vector.broadcast %1 : vector<56x1xf32> to vector<56x128xf32>
    %13 = arith.addf %11, %12 : vector<56x128xf32>
    %14 = math.tanh %13 : vector<56x128xf32>
    %c0_11 = arith.constant 0 : index
    %c0_12 = arith.constant 0 : index
    %15 = vector.load %arg4[%c0_11, %c0_12] : memref<112x56xf32, #tpu.memory_space<vmem>>, vector<112x56xf32>
    %cst_13 = arith.constant dense<0.000000e+00> : vector<112x128xf32>
    %16 = tpu.matmul %15, %14, %cst_13 {dimension_numbers = #tpu.dot_dimension_numbers<[1], [0], [0], [1], [0, 0, 1, 1], [], []>} : vector<112x56xf32>, vector<56x128xf32>, vector<112x128xf32> -> vector<112x128xf32>
    %17 = vector.broadcast %2 : vector<112x1xf32> to vector<112x128xf32>
    %18 = arith.addf %16, %17 : vector<112x128xf32>
    %19 = math.tanh %18 : vector<112x128xf32>
    %c0_14 = arith.constant 0 : index
    %c0_15 = arith.constant 0 : index
    %20 = vector.load %arg5[%c0_14, %c0_15] : memref<1x112xf32, #tpu.memory_space<vmem>>, vector<1x112xf32>
    %cst_16 = arith.constant dense<0.000000e+00> : vector<1x128xf32>
    %21 = tpu.matmul %20, %19, %cst_16 {dimension_numbers = #tpu.dot_dimension_numbers<[1], [0], [0], [1], [0, 0, 1, 1], [], []>} : vector<1x112xf32>, vector<112x128xf32>, vector<1x128xf32> -> vector<1x128xf32>
    %22 = vector.broadcast %3 : vector<1x1xf32> to vector<1x128xf32>
    %23 = arith.addf %21, %22 : vector<1x128xf32>
    %24 = arith.negf %23 : vector<1x128xf32>
    %25 = math.exp %24 : vector<1x128xf32>
    %cst_17 = arith.constant 1.000000e+00 : f32
    %26 = vector.broadcast %cst_17 : f32 to vector<1x128xf32>
    %27 = arith.addf %26, %25 : vector<1x128xf32>
    %28 = arith.divf %26, %27 : vector<1x128xf32>
    %c0_18 = arith.constant 0 : index
    %c0_19 = arith.constant 0 : index
    %29 = vector.load %arg7[%c0_18, %c0_19] : memref<1x128xf32, #tpu.memory_space<vmem>>, vector<1x128xf32>
    tpu.vector_store %arg7[%c0_18, %c0_19], %28 {strides = array<i32>} : memref<1x128xf32, #tpu.memory_space<vmem>>, vector<1x128xf32>,
    return
  }
  func.func @transform_0(%arg0: i32) -> (i32, i32) {
    %c0_i32 = arith.constant 0 : i32
    %c0_i32_0 = arith.constant 0 : i32
    return %c0_i32, %arg0 : i32, i32
  }
  func.func @transform_1(%arg0: i32) -> (i32, i32) {
    %c0_i32 = arith.constant 0 : i32
    %c0_i32_0 = arith.constant 0 : i32
    %c0_i32_1 = arith.constant 0 : i32
    return %c0_i32, %c0_i32_0 : i32, i32
  }
  func.func @transform_2(%arg0: i32) -> (i32, i32) {
    %c0_i32 = arith.constant 0 : i32
    %c0_i32_0 = arith.constant 0 : i32
    %c0_i32_1 = arith.constant 0 : i32
    return %c0_i32, %c0_i32_0 : i32, i32
  }
  func.func @transform_3(%arg0: i32) -> (i32, i32) {
    %c0_i32 = arith.constant 0 : i32
    %c0_i32_0 = arith.constant 0 : i32
    %c0_i32_1 = arith.constant 0 : i32
    return %c0_i32, %c0_i32_0 : i32, i32
  }
  func.func @transform_4(%arg0: i32) -> (i32, i32) {
    %c0_i32 = arith.constant 0 : i32
    %c0_i32_0 = arith.constant 0 : i32
    %c0_i32_1 = arith.constant 0 : i32
    return %c0_i32, %c0_i32_0 : i32, i32
  }
  func.func @transform_5(%arg0: i32) -> (i32, i32) {
    %c0_i32 = arith.constant 0 : i32
    %c0_i32_0 = arith.constant 0 : i32
    %c0_i32_1 = arith.constant 0 : i32
    return %c0_i32, %c0_i32_0 : i32, i32
  }
  func.func @transform_6(%arg0: i32) -> (i32, i32) {
    %c0_i32 = arith.constant 0 : i32
    %c0_i32_0 = arith.constant 0 : i32
    return %c0_i32, %arg0 : i32, i32
  }
}

</mosaic_0001>

<llo_original>
// kernel: neural_network_forward.1
$region0: #{neural_network_forward.1}
  #allocation0 [shape = 'u32[]', space=smem, size = 0x4, offset = 0x4, fixed_abs, tag = 'smem constant byte address 0x4 - core index']
  #allocation1 [shape = 'u32[144,128]{1,0:T(1,128)}', space=vmem, size = 0x12000, scoped, tag = 'internal scratch']
  %s0 = inlined_call_operand.vmem [shape: f32[7,8], index: 0, kind: input, shape index: {}]
  %s1 = inlined_call_operand.vmem [shape: f32[28,7], index: 1, kind: input, shape index: {}]
  %s2 = inlined_call_operand.vmem [shape: f32[56,28], index: 2, kind: input, shape index: {}]
  %s3 = inlined_call_operand.vmem [shape: f32[112,56], index: 3, kind: input, shape index: {}]
  %s4 = inlined_call_operand.vmem [shape: f32[1,112], index: 4, kind: input, shape index: {}]
  %s5 = inlined_call_operand.vmem [shape: f32[208,1], index: 5, kind: input, shape index: {}]
  %s6 = inlined_call_operand.hbm [shape: f32[1,8], index: 6, kind: output, shape index: {}]
  %s7 = sld [smem:[#allocation0]]
  $region34: #{neural_network_forward.1} parent=0
    _
  %s9 = ssub.s32 1, %s7
  %s10 = scalar_select 0, %s9, %s7
  $region1: #{neural_network_forward.1} parent=0
    #allocation2 [shape = 'u8[512]{0}', space=vmem, size = 0x400, scoped, tag = 'output window, operand 0, single buffered']
    #allocation3 [shape = 's32[1]{0}', space=sflag, size = 0x4, scoped, tag = 'scoped memory for neural_network_forward.1']
    %11 = vsyncpa [#allocation3], 0
    // Predicated region
    $region2: #{neural_network_forward.1} parent=1 // pred_check
      _
    $region3: #{neural_network_forward.1} parent=1 // pred_check_branch
      %13 = sbr.rel (0) target = $region5
    $region4: #{neural_network_forward.1} parent=1 // pred_region
      _
    $region5: #{neural_network_forward.1} parent=1 // pred_fallthru
      _
    // Predicated region
    $region6: #{neural_network_forward.1} parent=1 // pred_check
      _
    $region7: #{neural_network_forward.1} parent=1 // pred_check_branch
      %15 = sbr.rel (0) target = $region9
    $region8: #{neural_network_forward.1} parent=1 // pred_region
      _
    $region9: #{neural_network_forward.1} parent=1 // pred_fallthru
      _
    // Predicated region
    $region10: #{neural_network_forward.1} parent=1 // pred_check
      _
    $region11: #{neural_network_forward.1} parent=1 // pred_check_branch
      %17 = sbr.rel (0) target = $region13
    $region12: #{neural_network_forward.1} parent=1 // pred_region
      _
    $region13: #{neural_network_forward.1} parent=1 // pred_fallthru
      _
    // Predicated region
    $region14: #{neural_network_forward.1} parent=1 // pred_check
      _
    $region15: #{neural_network_forward.1} parent=1 // pred_check_branch
      %19 = sbr.rel (0) target = $region17
    $region16: #{neural_network_forward.1} parent=1 // pred_region
      _
    $region17: #{neural_network_forward.1} parent=1 // pred_fallthru
      _
    // Predicated region
    $region18: #{neural_network_forward.1} parent=1 // pred_check
      _
    $region19: #{neural_network_forward.1} parent=1 // pred_check_branch
      %21 = sbr.rel (0) target = $region21
    $region20: #{neural_network_forward.1} parent=1 // pred_region
      _
    $region21: #{neural_network_forward.1} parent=1 // pred_fallthru
      _
    // Predicated region
    $region22: #{neural_network_forward.1} parent=1 // pred_check
      _
    $region23: #{neural_network_forward.1} parent=1 // pred_check_branch
      %23 = sbr.rel (0) target = $region25
    $region24: #{neural_network_forward.1} parent=1 // pred_region
      _
    $region25: #{neural_network_forward.1} parent=1 // pred_fallthru
      _
    %v24 = vld [vmem:[%s5] sm:$0xff]
    %v25 = vld [vmem:[%s5 + $0x8] sm:$0xff]
    %v26 = vld [vmem:[%s5 + $0x10] sm:$0xff]
    %v27 = vld [vmem:[%s5 + $0x18] sm:$0xf]
    %v28 = vld [vmem:[%s5 + $0x20] sm:$0xff]
    %v29 = vld [vmem:[%s5 + $0x28] sm:$0xff]
    %v30 = vld [vmem:[%s5 + $0x30] sm:$0xff]
    %v31 = vld [vmem:[%s5 + $0x38] sm:$0xff]
    %v32 = vld [vmem:[%s5 + $0x40] sm:$0xff]
    %v33 = vld [vmem:[%s5 + $0x48] sm:$0xff]
    %v34 = vld [vmem:[%s5 + $0x50] sm:$0xff]
    %v35 = vld [vmem:[%s5 + $0x58] sm:$0xff]
    %v36 = vld [vmem:[%s5 + $0x60] sm:$0xff]
    %v37 = vld [vmem:[%s5 + $0x68] sm:$0xff]
    %v38 = vld [vmem:[%s5 + $0x70] sm:$0xff]
    %v39 = vld [vmem:[%s5 + $0x78] sm:$0xff]
    %v40 = vld [vmem:[%s5 + $0x80] sm:$0xff]
    %v41 = vld [vmem:[%s5 + $0x88] sm:$0xff]
    %v42 = vld [vmem:[%s5 + $0x90] sm:$0xff]
    %v43 = vld [vmem:[%s5 + $0x98] sm:$0xff]
    %v44 = vld [vmem:[%s5 + $0xa0] sm:$0xff]
    %v45 = vld [vmem:[%s5 + $0xa8] sm:$0xff]
    %v46 = vld [vmem:[%s5 + $0xb0] sm:$0xff]
    %v47 = vld [vmem:[%s5 + $0xb8] sm:$0xff]
    %v48 = vld [vmem:[%s5 + $0xc0] sm:$0xff]
    %v49 = vld [vmem:[%s5 + $0xc8] sm:$0x1]
    %v50 = vld [vmem:[%s0] sm:$0x7f]
    %v51 = vld [vmem:[%s1] sm:$0xff]
    %v52 = vld [vmem:[%s1 + $0x8] sm:$0xff]
    %v53 = vld [vmem:[%s1 + $0x10] sm:$0xff]
    %v54 = vld [vmem:[%s1 + $0x18] sm:$0xf]
    %56 = vset.pattern.permute.xlu0 0
    %57 = vperm.xlu0 %56, %v24
    %v58 = vpop.permute.xlu0 %57
    %61 = vset.pattern.permute.xlu0 0
    %62 = vperm.xlu0 %61, %v25
    %v63 = vpop.permute.xlu0 %62
    %66 = vset.pattern.permute.xlu0 0
    %67 = vperm.xlu0 %66, %v26
    %v68 = vpop.permute.xlu0 %67
    %71 = vset.pattern.permute.xlu0 0
    %72 = vperm.xlu0 %71, %v27
    %v73 = vpop.permute.xlu0 %72
    %vm75 = vcmask 56320
    %v77 = vsel %vm75, %v51, 0
    %v80 = vsel %vm75, %v52, 0
    %v83 = vsel %vm75, %v53, 0
    %v86 = vsel %vm75, %v54, 0
    %vm88 = vcmask 1046528
    %v90 = vsel %vm88, %v50, 0
    %92 = vmatprep.subr.mxu0 0.0
    %93 = vmatpush1.msra.mxu0 %v90
    %94 = vmatprep.subr.mxu0 0.0
    %95 = vmatpush1.msra.mxu0 0.0
    %96 = vmatprep.subr.mxu0 0.0
    %97 = vmatpush1.msra.mxu0 0.0
    %98 = vmatprep.subr.mxu0 0.0
    %99 = vmatpush1.msra.mxu0 0.0
    %100 = vmatprep.subr.mxu0 0.0
    %101 = vmatpush1.msra.mxu0 0.0
    %102 = vmatprep.subr.mxu0 0.0
    %103 = vmatpush1.msra.mxu0 0.0
    %104 = vmatprep.subr.mxu0 0.0
    %105 = vmatpush1.msra.mxu0 0.0
    %106 = vmatprep.subr.mxu0 0.0
    %107 = vmatpush1.msra.mxu0 0.0
    %108 = vmatprep.subr.mxu0 0.0
    %109 = vmatpush1.msra.mxu0 0.0
    %110 = vmatprep.subr.mxu0 0.0
    %111 = vmatpush1.msra.mxu0 0.0
    %112 = vmatprep.subr.mxu0 0.0
    %113 = vmatpush1.msra.mxu0 0.0
    %114 = vmatprep.subr.mxu0 0.0
    %115 = vmatpush1.msra.mxu0 0.0
    %116 = vmatprep.subr.mxu0 0.0
    %117 = vmatpush1.msra.mxu0 0.0
    %118 = vmatprep.subr.mxu0 0.0
    %119 = vmatpush1.msra.mxu0 0.0
    %120 = vmatprep.subr.mxu0 0.0
    %121 = vmatpush1.msra.mxu0 0.0
    %122 = vmatprep.subr.mxu0 0.0
    %123 = vmatpush1.msra.mxu0 0.0
    %124 = vmatprep.subr.mxu0 0.0
    %125 = vmatpush1.msra.mxu0 0.0
    %126 = vmatprep.subr.mxu0 0.0
    %127 = vmatpush1.msra.mxu0 0.0
    %128 = vmatprep.subr.mxu0 0.0
    %129 = vmatpush1.msra.mxu0 0.0
    %130 = vmatprep.subr.mxu0 0.0
    %131 = vmatpush1.msra.mxu0 0.0
    %132 = vmatprep.subr.mxu0 0.0
    %133 = vmatpush1.msra.mxu0 0.0
    %134 = vmatprep.subr.mxu0 0.0
    %135 = vmatpush1.msra.mxu0 0.0
    %136 = vmatprep.subr.mxu0 0.0
    %137 = vmatpush1.msra.mxu0 0.0
    %138 = vmatprep.subr.mxu0 0.0
    %139 = vmatpush1.msra.mxu0 0.0
    %140 = vmatprep.subr.mxu0 0.0
    %141 = vmatpush1.msra.mxu0 0.0
    %142 = vmatprep.subr.mxu0 0.0
    %143 = vmatpush1.msra.mxu0 0.0
    %144 = vmatprep.subr.mxu0 0.0
    %145 = vmatpush1.msra.mxu0 0.0
    %146 = vmatprep.subr.mxu0 0.0
    %147 = vmatpush1.msra.mxu0 0.0
    %148 = vmatprep.subr.mxu0 0.0
    %149 = vmatpush1.msra.mxu0 0.0
    %150 = vmatprep.subr.mxu0 0.0
    %151 = vmatpush1.msra.mxu0 0.0
    %152 = vmatprep.subr.mxu0 0.0
    %153 = vmatpush1.msra.mxu0 0.0
    %154 = vmatprep.subr.mxu0 0.0
    %155 = vmatpush1.msra.mxu0 0.0
    %156 = vmatprep.mubr.f32.mxu0 0.0
    %157 = vmatmul.mubr.f32.gmra.mrb[0].mxu0 %v77
    %v158 = vpop.f32.mrb[0].mxu0
    %v159 = vadd.f32 %v58, %v158
    %v160 = vpop.f32.mrb[0].mxu0
    %161 = vmatprep.mubr.f32.mxu0 0.0
    %162 = vmatmul.mubr.f32.gmra.mrb[0].mxu0 %v80
    %v163 = vpop.f32.mrb[0].mxu0
    %v164 = vadd.f32 %v63, %v163
    %v165 = vpop.f32.mrb[0].mxu0
    %166 = vmatprep.mubr.f32.mxu0 0.0
    %167 = vmatmul.mubr.f32.gmra.mrb[0].mxu0 %v83
    %v168 = vpop.f32.mrb[0].mxu0
    %v169 = vadd.f32 %v68, %v168
    %v170 = vpop.f32.mrb[0].mxu0
    %171 = vmatprep.mubr.f32.mxu0 0.0
    %172 = vmatmul.mubr.f32.gmra.mrb[0].mxu0 %v86
    %v173 = vpop.f32.mrb[0].mxu0
    %v174 = vadd.f32 %v73, %v173
    %v175 = vpop.f32.mrb[0].mxu0
    %176 = vdwg.mxu0
    %v177 = vtanh.pop %v159
    %v178 = vtanh.pop %v164
    %v179 = vtanh.pop %v169
    %v180 = vtanh.pop %v174
    %v181 = vld [vmem:[%s2] sm:$0xff]
    %v182 = vld [vmem:[%s2 + $0x8] sm:$0xff]
    %v183 = vld [vmem:[%s2 + $0x10] sm:$0xff]
    %v184 = vld [vmem:[%s2 + $0x18] sm:$0xff]
    %v185 = vld [vmem:[%s2 + $0x20] sm:$0xff]
    %v186 = vld [vmem:[%s2 + $0x28] sm:$0xff]
    %v187 = vld [vmem:[%s2 + $0x30] sm:$0xff]
    %189 = vset.pattern.permute.xlu0 0
    %190 = vperm.xlu0 %189, %v28
    %v191 = vpop.permute.xlu0 %190
    %194 = vset.pattern.permute.xlu0 0
    %195 = vperm.xlu0 %194, %v29
    %v196 = vpop.permute.xlu0 %195
    %199 = vset.pattern.permute.xlu0 0
    %200 = vperm.xlu0 %199, %v30
    %v201 = vpop.permute.xlu0 %200
    %204 = vset.pattern.permute.xlu0 0
    %205 = vperm.xlu0 %204, %v31
    %v206 = vpop.permute.xlu0 %205
    %209 = vset.pattern.permute.xlu0 0
    %210 = vperm.xlu0 %209, %v32
    %v211 = vpop.permute.xlu0 %210
    %214 = vset.pattern.permute.xlu0 0
    %215 = vperm.xlu0 %214, %v33
    %v216 = vpop.permute.xlu0 %215
    %219 = vset.pattern.permute.xlu0 0
    %220 = vperm.xlu0 %219, %v34
    %v221 = vpop.permute.xlu0 %220
    %vm223 = vcmask 228352
    %v225 = vsel %vm223, %v181, 0
    %v228 = vsel %vm223, %v182, 0
    %v231 = vsel %vm223, %v183, 0
    %v234 = vsel %vm223, %v184, 0
    %v237 = vsel %vm223, %v185, 0
    %v240 = vsel %vm223, %v186, 0
    %v243 = vsel %vm223, %v187, 0
    %vm245 = vcmask 1043456
    %v247 = vsel %vm245, %v180, 0
    %249 = vmatprep.subr.mxu0 0.0
    %250 = vmatpush1.msra.mxu0 %v177
    %251 = vmatprep.subr.mxu0 0.0
    %252 = vmatpush1.msra.mxu0 %v178
    %253 = vmatprep.subr.mxu0 0.0
    %254 = vmatpush1.msra.mxu0 %v179
    %255 = vmatprep.subr.mxu0 0.0
    %256 = vmatpush1.msra.mxu0 %v247
    %257 = vmatprep.subr.mxu0 0.0
    %258 = vmatpush1.msra.mxu0 0.0
    %259 = vmatprep.subr.mxu0 0.0
    %260 = vmatpush1.msra.mxu0 0.0
    %261 = vmatprep.subr.mxu0 0.0
    %262 = vmatpush1.msra.mxu0 0.0
    %263 = vmatprep.subr.mxu0 0.0
    %264 = vmatpush1.msra.mxu0 0.0
    %265 = vmatprep.subr.mxu0 0.0
    %266 = vmatpush1.msra.mxu0 0.0
    %267 = vmatprep.subr.mxu0 0.0
    %268 = vmatpush1.msra.mxu0 0.0
    %269 = vmatprep.subr.mxu0 0.0
    %270 = vmatpush1.msra.mxu0 0.0
    %271 = vmatprep.subr.mxu0 0.0
    %272 = vmatpush1.msra.mxu0 0.0
    %273 = vmatprep.subr.mxu0 0.0
    %274 = vmatpush1.msra.mxu0 0.0
    %275 = vmatprep.subr.mxu0 0.0
    %276 = vmatpush1.msra.mxu0 0.0
    %277 = vmatprep.subr.mxu0 0.0
    %278 = vmatpush1.msra.mxu0 0.0
    %279 = vmatprep.subr.mxu0 0.0
    %280 = vmatpush1.msra.mxu0 0.0
    %281 = vmatprep.subr.mxu0 0.0
    %282 = vmatpush1.msra.mxu0 0.0
    %283 = vmatprep.subr.mxu0 0.0
    %284 = vmatpush1.msra.mxu0 0.0
    %285 = vmatprep.subr.mxu0 0.0
    %286 = vmatpush1.msra.mxu0 0.0
    %287 = vmatprep.subr.mxu0 0.0
    %288 = vmatpush1.msra.mxu0 0.0
    %289 = vmatprep.subr.mxu0 0.0
    %290 = vmatpush1.msra.mxu0 0.0
    %291 = vmatprep.subr.mxu0 0.0
    %292 = vmatpush1.msra.mxu0 0.0
    %293 = vmatprep.subr.mxu0 0.0
    %294 = vmatpush1.msra.mxu0 0.0
    %295 = vmatprep.subr.mxu0 0.0
    %296 = vmatpush1.msra.mxu0 0.0
    %297 = vmatprep.subr.mxu0 0.0
    %298 = vmatpush1.msra.mxu0 0.0
    %299 = vmatprep.subr.mxu0 0.0
    %300 = vmatpush1.msra.mxu0 0.0
    %301 = vmatprep.subr.mxu0 0.0
    %302 = vmatpush1.msra.mxu0 0.0
    %303 = vmatprep.subr.mxu0 0.0
    %304 = vmatpush1.msra.mxu0 0.0
    %305 = vmatprep.subr.mxu0 0.0
    %306 = vmatpush1.msra.mxu0 0.0
    %307 = vmatprep.subr.mxu0 0.0
    %308 = vmatpush1.msra.mxu0 0.0
    %309 = vmatprep.subr.mxu0 0.0
    %310 = vmatpush1.msra.mxu0 0.0
    %311 = vmatprep.subr.mxu0 0.0
    %312 = vmatpush1.msra.mxu0 0.0
    %313 = vmatprep.mubr.f32.mxu0 0.0
    %314 = vmatmul.mubr.f32.gmra.mrb[0].mxu0 %v225
    %v315 = vpop.f32.mrb[0].mxu0
    %v316 = vadd.f32 %v191, %v315
    %v317 = vpop.f32.mrb[0].mxu0
    %318 = vmatprep.mubr.f32.mxu0 0.0
    %319 = vmatmul.mubr.f32.gmra.mrb[0].mxu0 %v228
    %v320 = vpop.f32.mrb[0].mxu0
    %v321 = vadd.f32 %v196, %v320
    %v322 = vpop.f32.mrb[0].mxu0
    %323 = vmatprep.mubr.f32.mxu0 0.0
    %324 = vmatmul.mubr.f32.gmra.mrb[0].mxu0 %v231
    %v325 = vpop.f32.mrb[0].mxu0
    %v326 = vadd.f32 %v201, %v325
    %v327 = vpop.f32.mrb[0].mxu0
    %328 = vmatprep.mubr.f32.mxu0 0.0
    %329 = vmatmul.mubr.f32.gmra.mrb[0].mxu0 %v234
    %v330 = vpop.f32.mrb[0].mxu0
    %v331 = vadd.f32 %v206, %v330
    %v332 = vpop.f32.mrb[0].mxu0
    %333 = vmatprep.mubr.f32.mxu0 0.0
    %334 = vmatmul.mubr.f32.gmra.mrb[0].mxu0 %v237
    %v335 = vpop.f32.mrb[0].mxu0
    %v336 = vadd.f32 %v211, %v335
    %v337 = vpop.f32.mrb[0].mxu0
    %338 = vmatprep.mubr.f32.mxu0 0.0
    %339 = vmatmul.mubr.f32.gmra.mrb[0].mxu0 %v240
    %v340 = vpop.f32.mrb[0].mxu0
    %v341 = vadd.f32 %v216, %v340
    %v342 = vpop.f32.mrb[0].mxu0
    %343 = vmatprep.mubr.f32.mxu0 0.0
    %344 = vmatmul.mubr.f32.gmra.mrb[0].mxu0 %v243
    %v345 = vpop.f32.mrb[0].mxu0
    %v346 = vadd.f32 %v221, %v345
    %v347 = vpop.f32.mrb[0].mxu0
    %348 = vdwg.mxu0
    %v349 = vtanh.pop %v316
    %v350 = vtanh.pop %v321
    %v351 = vtanh.pop %v326
    %v352 = vtanh.pop %v331
    %v353 = vtanh.pop %v336
    %v354 = vtanh.pop %v341
    %v355 = vtanh.pop %v346
    %v356 = vld [vmem:[%s3] sm:$0xff]
    %v357 = vld [vmem:[%s3 + $0x8] sm:$0xff]
    %v358 = vld [vmem:[%s3 + $0x10] sm:$0xff]
    %v359 = vld [vmem:[%s3 + $0x18] sm:$0xff]
    %v360 = vld [vmem:[%s3 + $0x20] sm:$0xff]
    %v361 = vld [vmem:[%s3 + $0x28] sm:$0xff]
    %v362 = vld [vmem:[%s3 + $0x30] sm:$0xff]
    %v363 = vld [vmem:[%s3 + $0x38] sm:$0xff]
    %v364 = vld [vmem:[%s3 + $0x40] sm:$0xff]
    %v365 = vld [vmem:[%s3 + $0x48] sm:$0xff]
    %v366 = vld [vmem:[%s3 + $0x50] sm:$0xff]
    %v367 = vld [vmem:[%s3 + $0x58] sm:$0xff]
    %v368 = vld [vmem:[%s3 + $0x60] sm:$0xff]
    %v369 = vld [vmem:[%s3 + $0x68] sm:$0xff]
    %371 = vset.pattern.permute.xlu0 0
    %372 = vperm.xlu0 %371, %v35
    %v373 = vpop.permute.xlu0 %372
    %376 = vset.pattern.permute.xlu0 0
    %377 = vperm.xlu0 %376, %v36
    %v378 = vpop.permute.xlu0 %377
    %381 = vset.pattern.permute.xlu0 0
    %382 = vperm.xlu0 %381, %v37
    %v383 = vpop.permute.xlu0 %382
    %386 = vset.pattern.permute.xlu0 0
    %387 = vperm.xlu0 %386, %v38
    %v388 = vpop.permute.xlu0 %387
    %391 = vset.pattern.permute.xlu0 0
    %392 = vperm.xlu0 %391, %v39
    %v393 = vpop.permute.xlu0 %392
    %396 = vset.pattern.permute.xlu0 0
    %397 = vperm.xlu0 %396, %v40
    %v398 = vpop.permute.xlu0 %397
    %401 = vset.pattern.permute.xlu0 0
    %402 = vperm.xlu0 %401, %v41
    %v403 = vpop.permute.xlu0 %402
    %406 = vset.pattern.permute.xlu0 0
    %407 = vperm.xlu0 %406, %v42
    %v408 = vpop.permute.xlu0 %407
    %411 = vset.pattern.permute.xlu0 0
    %412 = vperm.xlu0 %411, %v43
    %v413 = vpop.permute.xlu0 %412
    %416 = vset.pattern.permute.xlu0 0
    %417 = vperm.xlu0 %416, %v44
    %v418 = vpop.permute.xlu0 %417
    %421 = vset.pattern.permute.xlu0 0
    %422 = vperm.xlu0 %421, %v45
    %v423 = vpop.permute.xlu0 %422
    %426 = vset.pattern.permute.xlu0 0
    %427 = vperm.xlu0 %426, %v46
    %v428 = vpop.permute.xlu0 %427
    %431 = vset.pattern.permute.xlu0 0
    %432 = vperm.xlu0 %431, %v47
    %v433 = vpop.permute.xlu0 %432
    %436 = vset.pattern.permute.xlu0 0
    %437 = vperm.xlu0 %436, %v48
    %v438 = vpop.permute.xlu0 %437
    %vm440 = vcmask 457728
    %v442 = vsel %vm440, %v356, 0
    %v445 = vsel %vm440, %v357, 0
    %v448 = vsel %vm440, %v358, 0
    %v451 = vsel %vm440, %v359, 0
    %v454 = vsel %vm440, %v360, 0
    %v457 = vsel %vm440, %v361, 0
    %v460 = vsel %vm440, %v362, 0
    %v463 = vsel %vm440, %v363, 0
    %v466 = vsel %vm440, %v364, 0
    %v469 = vsel %vm440, %v365, 0
    %v472 = vsel %vm440, %v366, 0
    %v475 = vsel %vm440, %v367, 0
    %v478 = vsel %vm440, %v368, 0
    %v481 = vsel %vm440, %v369, 0
    %483 = vmatprep.subr.mxu0 0.0
    %484 = vmatpush1.msra.mxu0 %v349
    %485 = vmatprep.subr.mxu0 0.0
    %486 = vmatpush1.msra.mxu0 %v350
    %487 = vmatprep.subr.mxu0 0.0
    %488 = vmatpush1.msra.mxu0 %v351
    %489 = vmatprep.subr.mxu0 0.0
    %490 = vmatpush1.msra.mxu0 %v352
    %491 = vmatprep.subr.mxu0 0.0
    %492 = vmatpush1.msra.mxu0 %v353
    %493 = vmatprep.subr.mxu0 0.0
    %494 = vmatpush1.msra.mxu0 %v354
    %495 = vmatprep.subr.mxu0 0.0
    %496 = vmatpush1.msra.mxu0 %v355
    %497 = vmatprep.subr.mxu0 0.0
    %498 = vmatpush1.msra.mxu0 0.0
    %499 = vmatprep.subr.mxu0 0.0
    %500 = vmatpush1.msra.mxu0 0.0
    %501 = vmatprep.subr.mxu0 0.0
    %502 = vmatpush1.msra.mxu0 0.0
    %503 = vmatprep.subr.mxu0 0.0
    %504 = vmatpush1.msra.mxu0 0.0
    %505 = vmatprep.subr.mxu0 0.0
    %506 = vmatpush1.msra.mxu0 0.0
    %507 = vmatprep.subr.mxu0 0.0
    %508 = vmatpush1.msra.mxu0 0.0
    %509 = vmatprep.subr.mxu0 0.0
    %510 = vmatpush1.msra.mxu0 0.0
    %511 = vmatprep.subr.mxu0 0.0
    %512 = vmatpush1.msra.mxu0 0.0
    %513 = vmatprep.subr.mxu0 0.0
    %514 = vmatpush1.msra.mxu0 0.0
    %515 = vmatprep.subr.mxu0 0.0
    %516 = vmatpush1.msra.mxu0 0.0
    %517 = vmatprep.subr.mxu0 0.0
    %518 = vmatpush1.msra.mxu0 0.0
    %519 = vmatprep.subr.mxu0 0.0
    %520 = vmatpush1.msra.mxu0 0.0
    %521 = vmatprep.subr.mxu0 0.0
    %522 = vmatpush1.msra.mxu0 0.0
    %523 = vmatprep.subr.mxu0 0.0
    %524 = vmatpush1.msra.mxu0 0.0
    %525 = vmatprep.subr.mxu0 0.0
    %526 = vmatpush1.msra.mxu0 0.0
    %527 = vmatprep.subr.mxu0 0.0
    %528 = vmatpush1.msra.mxu0 0.0
    %529 = vmatprep.subr.mxu0 0.0
    %530 = vmatpush1.msra.mxu0 0.0
    %531 = vmatprep.subr.mxu0 0.0
    %532 = vmatpush1.msra.mxu0 0.0
    %533 = vmatprep.subr.mxu0 0.0
    %534 = vmatpush1.msra.mxu0 0.0
    %535 = vmatprep.subr.mxu0 0.0
    %536 = vmatpush1.msra.mxu0 0.0
    %537 = vmatprep.subr.mxu0 0.0
    %538 = vmatpush1.msra.mxu0 0.0
    %539 = vmatprep.subr.mxu0 0.0
    %540 = vmatpush1.msra.mxu0 0.0
    %541 = vmatprep.subr.mxu0 0.0
    %542 = vmatpush1.msra.mxu0 0.0
    %543 = vmatprep.subr.mxu0 0.0
    %544 = vmatpush1.msra.mxu0 0.0
    %545 = vmatprep.subr.mxu0 0.0
    %546 = vmatpush1.msra.mxu0 0.0
    %547 = vmatprep.mubr.f32.mxu0 0.0
    %548 = vmatmul.mubr.f32.gmra.mrb[0].mxu0 %v442
    %v549 = vpop.f32.mrb[0].mxu0
    %v550 = vadd.f32 %v373, %v549
    %v551 = vpop.f32.mrb[0].mxu0
    %552 = vmatprep.mubr.f32.mxu0 0.0
    %553 = vmatmul.mubr.f32.gmra.mrb[0].mxu0 %v445
    %v554 = vpop.f32.mrb[0].mxu0
    %v555 = vadd.f32 %v378, %v554
    %v556 = vpop.f32.mrb[0].mxu0
    %557 = vmatprep.mubr.f32.mxu0 0.0
    %558 = vmatmul.mubr.f32.gmra.mrb[0].mxu0 %v448
    %v559 = vpop.f32.mrb[0].mxu0
    %v560 = vadd.f32 %v383, %v559
    %v561 = vpop.f32.mrb[0].mxu0
    %562 = vmatprep.mubr.f32.mxu0 0.0
    %563 = vmatmul.mubr.f32.gmra.mrb[0].mxu0 %v451
    %v564 = vpop.f32.mrb[0].mxu0
    %v565 = vadd.f32 %v388, %v564
    %v566 = vpop.f32.mrb[0].mxu0
    %567 = vmatprep.mubr.f32.mxu0 0.0
    %568 = vmatmul.mubr.f32.gmra.mrb[0].mxu0 %v454
    %v569 = vpop.f32.mrb[0].mxu0
    %v570 = vadd.f32 %v393, %v569
    %v571 = vpop.f32.mrb[0].mxu0
    %572 = vmatprep.mubr.f32.mxu0 0.0
    %573 = vmatmul.mubr.f32.gmra.mrb[0].mxu0 %v457
    %v574 = vpop.f32.mrb[0].mxu0
    %v575 = vadd.f32 %v398, %v574
    %v576 = vpop.f32.mrb[0].mxu0
    %577 = vmatprep.mubr.f32.mxu0 0.0
    %578 = vmatmul.mubr.f32.gmra.mrb[0].mxu0 %v460
    %v579 = vpop.f32.mrb[0].mxu0
    %v580 = vadd.f32 %v403, %v579
    %v581 = vpop.f32.mrb[0].mxu0
    %582 = vmatprep.mubr.f32.mxu0 0.0
    %583 = vmatmul.mubr.f32.gmra.mrb[0].mxu0 %v463
    %v584 = vpop.f32.mrb[0].mxu0
    %v585 = vadd.f32 %v408, %v584
    %v586 = vpop.f32.mrb[0].mxu0
    %587 = vmatprep.mubr.f32.mxu0 0.0
    %588 = vmatmul.mubr.f32.gmra.mrb[0].mxu0 %v466
    %v589 = vpop.f32.mrb[0].mxu0
    %v590 = vadd.f32 %v413, %v589
    %v591 = vpop.f32.mrb[0].mxu0
    %592 = vmatprep.mubr.f32.mxu0 0.0
    %593 = vmatmul.mubr.f32.gmra.mrb[0].mxu0 %v469
    %v594 = vpop.f32.mrb[0].mxu0
    %v595 = vadd.f32 %v418, %v594
    %v596 = vpop.f32.mrb[0].mxu0
    %597 = vmatprep.mubr.f32.mxu0 0.0
    %598 = vmatmul.mubr.f32.gmra.mrb[0].mxu0 %v472
    %v599 = vpop.f32.mrb[0].mxu0
    %v600 = vadd.f32 %v423, %v599
    %v601 = vpop.f32.mrb[0].mxu0
    %602 = vmatprep.mubr.f32.mxu0 0.0
    %603 = vmatmul.mubr.f32.gmra.mrb[0].mxu0 %v475
    %v604 = vpop.f32.mrb[0].mxu0
    %v605 = vadd.f32 %v428, %v604
    %v606 = vpop.f32.mrb[0].mxu0
    %607 = vmatprep.mubr.f32.mxu0 0.0
    %608 = vmatmul.mubr.f32.gmra.mrb[0].mxu0 %v478
    %v609 = vpop.f32.mrb[0].mxu0
    %v610 = vadd.f32 %v433, %v609
    %v611 = vpop.f32.mrb[0].mxu0
    %612 = vmatprep.mubr.f32.mxu0 0.0
    %613 = vmatmul.mubr.f32.gmra.mrb[0].mxu0 %v481
    %v614 = vpop.f32.mrb[0].mxu0
    %v615 = vadd.f32 %v438, %v614
    %v616 = vpop.f32.mrb[0].mxu0
    %617 = vdwg.mxu0
    %v618 = vtanh.pop %v550
    %v619 = vtanh.pop %v555
    %v620 = vtanh.pop %v560
    %v621 = vtanh.pop %v565
    %v622 = vtanh.pop %v570
    %v623 = vtanh.pop %v575
    %v624 = vtanh.pop %v580
    %v625 = vtanh.pop %v585
    %v626 = vtanh.pop %v590
    %v627 = vtanh.pop %v595
    %v628 = vtanh.pop %v600
    %v629 = vtanh.pop %v605
    %v630 = vtanh.pop %v610
    %v631 = vtanh.pop %v615
    %v632 = vld [vmem:[%s4] sm:$0x1]
    %634 = vset.pattern.permute.xlu0 0
    %635 = vperm.xlu0 %634, %v49
    %v636 = vpop.permute.xlu0 %635
    %vm638 = vcmask 916480
    %v640 = vsel %vm638, %v632, 0
    %642 = vmatprep.subr.mxu0 0.0
    %643 = vmatpush1.msra.mxu0 %v618
    %644 = vmatprep.subr.mxu0 0.0
    %645 = vmatpush1.msra.mxu0 %v619
    %646 = vmatprep.subr.mxu0 0.0
    %647 = vmatpush1.msra.mxu0 %v620
    %648 = vmatprep.subr.mxu0 0.0
    %649 = vmatpush1.msra.mxu0 %v621
    %650 = vmatprep.subr.mxu0 0.0
    %651 = vmatpush1.msra.mxu0 %v622
    %652 = vmatprep.subr.mxu0 0.0
    %653 = vmatpush1.msra.mxu0 %v623
    %654 = vmatprep.subr.mxu0 0.0
    %655 = vmatpush1.msra.mxu0 %v624
    %656 = vmatprep.subr.mxu0 0.0
    %657 = vmatpush1.msra.mxu0 %v625
    %658 = vmatprep.subr.mxu0 0.0
    %659 = vmatpush1.msra.mxu0 %v626
    %660 = vmatprep.subr.mxu0 0.0
    %661 = vmatpush1.msra.mxu0 %v627
    %662 = vmatprep.subr.mxu0 0.0
    %663 = vmatpush1.msra.mxu0 %v628
    %664 = vmatprep.subr.mxu0 0.0
    %665 = vmatpush1.msra.mxu0 %v629
    %666 = vmatprep.subr.mxu0 0.0
    %667 = vmatpush1.msra.mxu0 %v630
    %668 = vmatprep.subr.mxu0 0.0
    %669 = vmatpush1.msra.mxu0 %v631
    %670 = vmatprep.subr.mxu0 0.0
    %671 = vmatpush1.msra.mxu0 0.0
    %672 = vmatprep.subr.mxu0 0.0
    %673 = vmatpush1.msra.mxu0 0.0
    %674 = vmatprep.subr.mxu0 0.0
    %675 = vmatpush1.msra.mxu0 0.0
    %676 = vmatprep.subr.mxu0 0.0
    %677 = vmatpush1.msra.mxu0 0.0
    %678 = vmatprep.subr.mxu0 0.0
    %679 = vmatpush1.msra.mxu0 0.0
    %680 = vmatprep.subr.mxu0 0.0
    %681 = vmatpush1.msra.mxu0 0.0
    %682 = vmatprep.subr.mxu0 0.0
    %683 = vmatpush1.msra.mxu0 0.0
    %684 = vmatprep.subr.mxu0 0.0
    %685 = vmatpush1.msra.mxu0 0.0
    %686 = vmatprep.subr.mxu0 0.0
    %687 = vmatpush1.msra.mxu0 0.0
    %688 = vmatprep.subr.mxu0 0.0
    %689 = vmatpush1.msra.mxu0 0.0
    %690 = vmatprep.subr.mxu0 0.0
    %691 = vmatpush1.msra.mxu0 0.0
    %692 = vmatprep.subr.mxu0 0.0
    %693 = vmatpush1.msra.mxu0 0.0
    %694 = vmatprep.subr.mxu0 0.0
    %695 = vmatpush1.msra.mxu0 0.0
    %696 = vmatprep.subr.mxu0 0.0
    %697 = vmatpush1.msra.mxu0 0.0
    %698 = vmatprep.subr.mxu0 0.0
    %699 = vmatpush1.msra.mxu0 0.0
    %700 = vmatprep.subr.mxu0 0.0
    %701 = vmatpush1.msra.mxu0 0.0
    %702 = vmatprep.subr.mxu0 0.0
    %703 = vmatpush1.msra.mxu0 0.0
    %704 = vmatprep.subr.mxu0 0.0
    %705 = vmatpush1.msra.mxu0 0.0
    %706 = vmatprep.mubr.f32.mxu0 0.0
    %707 = vmatmul.mubr.f32.gmra.mrb[0].mxu0 %v640
    %v708 = vpop.f32.mrb[0].mxu0
    %v709 = vadd.f32 %v636, %v708
    %v710 = vpop.f32.mrb[0].mxu0
    %711 = vdwg.mxu0
    %v712 = vxor.u32 %v709, 2147483648
    %v713 = vmul.f32 %v712, 1.442695
    %v714 = vpow.pop %v713
    %v715 = vadd.f32 %v714, 1.0
    %v716 = vrcp.pop %v715
    %v717 = vmul.f32 1.0, %v716
    %718 = vst [vmem:[#allocation2] sm:$0x1] %v717
    // Predicated region
    $region26: #{neural_network_forward.1} parent=1 // pred_check
      _
    $region27: #{neural_network_forward.1} parent=1 // pred_check_branch
      %720 = sbr.rel (0) target = $region29
    $region28: #{neural_network_forward.1} parent=1 // pred_region
      %s722 = ssub.s32 16, 16
      %723 = vsyncadd [#allocation3], %s722
      %s725 = sshll.u32 [#allocation2], 4
      %s726 = int_to_ptr.vmem [resolvable:$true] %s725
      %728 = dma.vmem_to_hbm [thread:$0]  %s726, 16, %s6, [#allocation3]
    $region29: #{neural_network_forward.1} parent=1 // pred_fallthru
      _
    // Predicated region
    $region30: #{neural_network_forward.1} parent=1 // pred_check
      _
    $region31: #{neural_network_forward.1} parent=1 // pred_check_branch
      %730 = sbr.rel (0) target = $region33
    $region32: #{neural_network_forward.1} parent=1 // pred_region
      %731 = dma.done [#allocation3], 16
    $region33: #{neural_network_forward.1} parent=1 // pred_fallthru
      _
    %732 = vsyncpa [#allocation3], 1

</llo_original>
